<compile_context>
chip_gen: v6e
topology: v6e:2x2x1
jax: 0.10.0
libtpu: 0.0.40
codegen_flags: <defaults>
</compile_context>

<pallas_src>
import jax
import jax.numpy as jnp
from jax.experimental import pallas as pl
from jax.experimental.pallas import tpu as pltpu


def _add_relu_kernel(a_ref, b_ref, o_ref):
    # Elementwise hot path on the whole VMEM tile: add + relu.
    s = a_ref[...] + b_ref[...]
    o_ref[...] = jnp.maximum(s, jnp.array(0, s.dtype))


def _round_up(x, m):
    return ((x + m - 1) // m) * m


def _sublane_granularity(dtype):
    # Sub-32-bit dtypes pack along sublanes: bf16 vreg = 16x128, int8 = 32x128.
    itemsize = jnp.dtype(dtype).itemsize
    if itemsize >= 4:
        return 8
    if itemsize == 2:
        return 16
    return 32


def _pick_row_tile(rows, cols, dtype, max_tile_bytes):
    """Row tile that is a multiple of the sublane granularity, fits the
    per-operand VMEM budget, and leaves >= 2 grid steps for megacore when
    there is enough work. Ragged last blocks are handled by pl.cdiv grids."""
    itemsize = jnp.dtype(dtype).itemsize
    g = _sublane_granularity(dtype)
    # Largest multiple of g under the per-operand tile budget (at least g).
    budget_rows = max(g, (max_tile_bytes // (cols * itemsize)) // g * g)
    row_tile = min(_round_up(rows, g), budget_rows)
    # Keep >= 2 grid steps when rows permit, so a 2-TC chip (v7x) can split
    # the "parallel" grid axis instead of idling one core.
    if rows >= 2 * g:
        half = _round_up(pl.cdiv(rows, 2), g)
        row_tile = min(row_tile, half)
    return row_tile


def add_relu(x140, x132, *, max_tile_bytes=2 * 1024 * 1024):
    assert x140.shape == x132.shape and x140.dtype == x132.dtype
    orig_shape = x140.shape
    dtype = x140.dtype
    itemsize = jnp.dtype(dtype).itemsize
    total = x140.size

    # Lane-dense layout: always present a (rows, 128) slab to the kernel;
    # pad the flattened buffer if needed and slice the result afterwards.
    cols = 128
    g = _sublane_granularity(dtype)
    padded_total = _round_up(total, cols * g)

    a_flat = x140.reshape(-1)
    b_flat = x132.reshape(-1)
    if padded_total != total:
        pad = padded_total - total
        a_flat = jnp.pad(a_flat, (0, pad))
        b_flat = jnp.pad(b_flat, (0, pad))

    rows = padded_total // cols
    a2 = a_flat.reshape(rows, cols)
    b2 = b_flat.reshape(rows, cols)

    row_tile = _pick_row_tile(rows, cols, dtype, max_tile_bytes)
    grid = (pl.cdiv(rows, row_tile),)
    blk = (row_tile, cols)
    idx = lambda i: (i, 0)

    out2 = pl.pallas_call(
        _add_relu_kernel,
        out_shape=jax.ShapeDtypeStruct((rows, cols), dtype),
        grid=grid,
        in_specs=[
            pl.BlockSpec(blk, idx),
            pl.BlockSpec(blk, idx),
        ],
        out_specs=pl.BlockSpec(blk, idx),
        compiler_params=pltpu.CompilerParams(
            dimension_semantics=("parallel",),
        ),
        cost_estimate=pl.CostEstimate(
            flops=2 * total,                      # add + max
            bytes_accessed=3 * total * itemsize,  # 2 reads + 1 write
            transcendentals=0,
        ),
    )(a2, b2)

    out_flat = out2.reshape(-1)
    if padded_total != total:
        out_flat = out_flat[:total]
    return out_flat.reshape(orig_shape)


if __name__ == "__main__":
    key = jax.random.PRNGKey(0)
    k1, k2 = jax.random.split(key)
    # Small NCHW shape consistent with the module's [1, C, 28, 28] inputs.
    shape = (1, 64, 28, 28)
    x140 = jax.random.normal(k1, shape, dtype=jnp.float32)
    x132 = jax.random.normal(k2, shape, dtype=jnp.float32)

    out = add_relu(x140, x132)
    out = jax.block_until_ready(out)

    # Correctness check against plain JAX reference.
    ref = jnp.maximum(x140 + x132, 0.0)
    assert out.shape == ref.shape and out.dtype == ref.dtype
    assert jnp.allclose(out, ref, atol=1e-6, rtol=1e-6)

    print("KERNEL_OK")
</pallas_src>

<mosaic_0001>
module attributes {stable_mosaic.version = 11 : i64} {
  func.func @_add_relu_kernel(%arg0: i32, %arg1: memref<200x128xf32, #tpu.memory_space<vmem>>, %arg2: memref<200x128xf32, #tpu.memory_space<vmem>>, %arg3: memref<200x128xf32, #tpu.memory_space<vmem>>) attributes {dimension_semantics = [#tpu.dimension_semantics<parallel>], iteration_bounds = array<i64: 2>, scalar_prefetch = 0 : i64, scratch_operands = 0 : i64, tpu.core_type = #tpu.core_type<tc>, window_params = [{transform_indices = @transform_0, window_bounds = array<i64: 200, 128>}, {transform_indices = @transform_1, window_bounds = array<i64: 200, 128>}, {transform_indices = @transform_2, window_bounds = array<i64: 200, 128>}]} {
    %c0 = arith.constant 0 : index
    %c0_0 = arith.constant 0 : index
    %0 = vector.load %arg1[%c0, %c0_0] : memref<200x128xf32, #tpu.memory_space<vmem>>, vector<200x128xf32>
    %c0_1 = arith.constant 0 : index
    %c0_2 = arith.constant 0 : index
    %1 = vector.load %arg2[%c0_1, %c0_2] : memref<200x128xf32, #tpu.memory_space<vmem>>, vector<200x128xf32>
    %2 = arith.addf %0, %1 : vector<200x128xf32>
    %cst = arith.constant 0.000000e+00 : f32
    %3 = vector.broadcast %cst : f32 to vector<200x128xf32>
    %4 = arith.maximumf %2, %3 : vector<200x128xf32>
    %c0_3 = arith.constant 0 : index
    %c0_4 = arith.constant 0 : index
    %5 = vector.load %arg3[%c0_3, %c0_4] : memref<200x128xf32, #tpu.memory_space<vmem>>, vector<200x128xf32>
    tpu.vector_store %arg3[%c0_3, %c0_4], %4 {strides = array<i32>} : memref<200x128xf32, #tpu.memory_space<vmem>>, vector<200x128xf32>,
    return
  }
  func.func @transform_0(%arg0: i32) -> (i32, i32) {
    %c0_i32 = arith.constant 0 : i32
    %c0_i32_0 = arith.constant 0 : i32
    return %arg0, %c0_i32 : i32, i32
  }
  func.func @transform_1(%arg0: i32) -> (i32, i32) {
    %c0_i32 = arith.constant 0 : i32
    %c0_i32_0 = arith.constant 0 : i32
    return %arg0, %c0_i32 : i32, i32
  }
  func.func @transform_2(%arg0: i32) -> (i32, i32) {
    %c0_i32 = arith.constant 0 : i32
    %c0_i32_0 = arith.constant 0 : i32
    return %arg0, %c0_i32 : i32, i32
  }
}

</mosaic_0001>

<llo_original>
// kernel: tpu_custom_call.1
$region0: #{tpu_custom_call.1}
  #allocation0 [shape = 'u32[]', space=smem, size = 0x4, offset = 0x4, fixed_abs, tag = 'smem constant byte address 0x4 - core index']
  #allocation1 [shape = 'u32[144,128]{1,0:T(1,128)}', space=vmem, size = 0x12000, scoped, tag = 'internal scratch']
  %s0 = inlined_call_operand.hbm [shape: f32[392,128], index: 0, kind: input, shape index: {}]
  %s1 = inlined_call_operand.hbm [shape: f32[392,128], index: 1, kind: input, shape index: {}]
  %s2 = inlined_call_operand.hbm [shape: f32[392,128], index: 2, kind: output, shape index: {}]
  %s3 = sld [smem:[#allocation0]]
  $region49: #{tpu_custom_call.1} parent=0
    _
  %s5 = ssub.s32 1, %s3
  %s6 = scalar_select 0, %s5, %s3
  $region1: #{tpu_custom_call.1} parent=0
    #allocation2 [shape = 'u8[204800]{0}', space=vmem, size = 0x32000, scoped, tag = 'input window, operand 0']
    #allocation3 [shape = 's32[2]{0}', space=sflag, size = 0x8, scoped, tag = 'scoped memory for tpu_custom_call.1']
    #allocation4 [shape = 's32[2]{0}', space=sflag, size = 0x8, scoped, tag = 'scoped memory for tpu_custom_call.1']
    #allocation5 [shape = 'u8[204800]{0}', space=vmem, size = 0x32000, scoped, tag = 'input window, operand 1']
    #allocation6 [shape = 's32[2]{0}', space=sflag, size = 0x8, scoped, tag = 'scoped memory for tpu_custom_call.1']
    #allocation7 [shape = 'u8[204800]{0}', space=vmem, size = 0x32000, scoped, tag = 'output window, operand 0']
    %7 = vsyncpa [#allocation3], 0
    %s8 = scalar_lea.sflag [#allocation3], 1
    %9 = vsyncpa %s8, 0
    %10 = vsyncpa [#allocation6], 0
    %s11 = scalar_lea.sflag [#allocation6], 1
    %12 = vsyncpa %s11, 0
    %13 = vsyncpa [#allocation4], 0
    %s14 = scalar_lea.sflag [#allocation4], 1
    %15 = vsyncpa %s14, 0
    loop: start=0, step=1, limit=4
    $region2: #{tpu_custom_call.1} parent=1 // loop_pre_header
      _
    $region3: #{tpu_custom_call.1} parent=1 // loop_header
      %s17 = sphi 0, %s21
      %p18 = scmp.ge.s32.totalorder %s17, 4
      %s27 = sphi 0, %s29
      %s30 = sphi 0, %s27
      %s31 = sphi 0, %s30
      %s47 = sphi 0, %s31
      %s53 = sphi 0, %s55
      %s56 = sphi 0, %s53
      %s57 = sphi 0, %s56
      %s73 = sphi 0, %s57
      %s79 = sphi 0, %s81
      %s82 = sphi 0, %s79
      %s83 = sphi 0, %s82
      %s99 = sphi 0, %s83
    $region4: #{tpu_custom_call.1} parent=1 // loop_header_branch
      %20 = sbr.rel (%p18) target = $region8
    $region5: #{tpu_custom_call.1} parent=1 // loop_body
      %s22 = ssub.s32 %s17, 1
      %s23 = ssub.s32 %s17, 2
      %s24 = sadd.s32 %s17, 1
      %s25 = ssub.s32 %s17, %s24
      %p26 = scmp.eq.s32.totalorder %s25, 0
      %s28 = sadd.s32 %s27, 1
      %s29 = scalar_select %p26, %s27, %s28
      %p32 = pneg %p26
      %p33 = scmp.eq.s32.totalorder %s17, 1
      %p34 = por %p32, %p33
      %p35 = scmp.ne.s32.totalorder %s27, %s30
      %p36 = scmp.eq.s32.totalorder %s17, 0
      %p37 = por %p35, %p36
      %p38 = scmp.ne.s32.totalorder %s27, %s30
      %p39 = scmp.eq.s32.totalorder %s22, 1
      %p40 = por %p38, %p39
      %p41 = scmp.ne.s32.totalorder %s30, %s31
      %p42 = scmp.eq.s32.totalorder %s22, 0
      %p43 = por %p41, %p42
      %p44 = scmp.ne.s32.totalorder %s30, %s31
      %p45 = scmp.eq.s32.totalorder %s23, 1
      %p46 = por %p44, %p45
      %p48 = scmp.ne.s32.totalorder %s31, %s47
      %p49 = scmp.eq.s32.totalorder %s23, 0
      %p50 = por %p48, %p49
      %s51 = ssub.s32 %s17, %s24
      %p52 = scmp.eq.s32.totalorder %s51, 0
      %s54 = sadd.s32 %s53, 1
      %s55 = scalar_select %p52, %s53, %s54
      %p58 = pneg %p52
      %p59 = scmp.eq.s32.totalorder %s17, 1
      %p60 = por %p58, %p59
      %p61 = scmp.ne.s32.totalorder %s53, %s56
      %p62 = scmp.eq.s32.totalorder %s17, 0
      %p63 = por %p61, %p62
      %p64 = scmp.ne.s32.totalorder %s53, %s56
      %p65 = scmp.eq.s32.totalorder %s22, 1
      %p66 = por %p64, %p65
      %p67 = scmp.ne.s32.totalorder %s56, %s57
      %p68 = scmp.eq.s32.totalorder %s22, 0
      %p69 = por %p67, %p68
      %p70 = scmp.ne.s32.totalorder %s56, %s57
      %p71 = scmp.eq.s32.totalorder %s23, 1
      %p72 = por %p70, %p71
      %p74 = scmp.ne.s32.totalorder %s57, %s73
      %p75 = scmp.eq.s32.totalorder %s23, 0
      %p76 = por %p74, %p75
      %s77 = ssub.s32 %s17, %s24
      %p78 = scmp.eq.s32.totalorder %s77, 0
      %s80 = sadd.s32 %s79, 1
      %s81 = scalar_select %p78, %s79, %s80
      %p84 = pneg %p78
      %p85 = scmp.eq.s32.totalorder %s17, 1
      %p86 = por %p84, %p85
      %p87 = scmp.ne.s32.totalorder %s79, %s82
      %p88 = scmp.eq.s32.totalorder %s17, 0
      %p89 = por %p87, %p88
      %p90 = scmp.ne.s32.totalorder %s79, %s82
      %p91 = scmp.eq.s32.totalorder %s22, 1
      %p92 = por %p90, %p91
      %p93 = scmp.ne.s32.totalorder %s82, %s83
      %p94 = scmp.eq.s32.totalorder %s22, 0
      %p95 = por %p93, %p94
      %p96 = scmp.ne.s32.totalorder %s82, %s83
      %p97 = scmp.eq.s32.totalorder %s23, 1
      %p98 = por %p96, %p97
      %p100 = scmp.ne.s32.totalorder %s83, %s99
      %p101 = scmp.eq.s32.totalorder %s23, 0
      %p102 = por %p100, %p101
      %p103 = scmp.le.s32.totalorder 1, %s17
      %p104 = scmp.lt.s32.totalorder %s17, 3
      %p105 = pnand %p103, %p104
      %p106 = pneg %p105
      // Predicated region
      $region9: #{tpu_custom_call.1} parent=5 // pred_check
        _
      $region10: #{tpu_custom_call.1} parent=5 // pred_check_branch
        %108 = sbr.rel (%p105) target = $region12
      $region11: #{tpu_custom_call.1} parent=5 // pred_region
        %s109 = ssub.s32 %s17, 1
      $region12: #{tpu_custom_call.1} parent=5 // pred_fallthru
        _
      %p110 = scmp.lt.s32.totalorder %s17, 2
      // Predicated region
      $region13: #{tpu_custom_call.1} parent=5 // pred_check
        %p111 = pneg %p110
      $region14: #{tpu_custom_call.1} parent=5 // pred_check_branch
        %113 = sbr.rel (%p111) target = $region16
      $region15: #{tpu_custom_call.1} parent=5 // pred_region
        // Predicated region
        $region17: #{tpu_custom_call.1} parent=15 // pred_check
          %p114 = pneg %p37
        $region18: #{tpu_custom_call.1} parent=15 // pred_check_branch
          %116 = sbr.rel (%p114) target = $region20
        $region19: #{tpu_custom_call.1} parent=15 // pred_region
          %s117 = sand.u32 %s27, 1
          %s118 = scalar_lea.sflag [#allocation3], %s117
          %s119 = sand.u32 %s27, 1
          %s120 = smul.addr %s119, 200
          %s121 = scalar_lea.vmem [#allocation2], %s120
          %s122 = smul.u32 25, %s17
          %s123 = ssub.s32 49, %s122
          %p124 = scmp.lt.s32.totalorder %s123, 25
          %s125 = scalar_select %p124, %s123, 25
          %s126 = smul.u32 128, %s125
          %s128 = ssub.s32 3200, %s126
          %129 = vsyncadd %s118, %s128
          %p130 = scmp.ne.s32.totalorder 0, %s126
          %s131 = smul.addr %s122, 128
          %s132 = scalar_lea.hbm %s0, %s131
          %s133 = smul.u32 8, %s125
          %s134 = sshll.u32 %s121, 4
          %s135 = int_to_ptr.vmem [resolvable:$true] %s134
          %s136 = sshll.u32 %s133, 4
          %140 = dma.hbm_to_vmem [thread:$0]  (%p130), %s132, %s136, %s135, %s118, 128, 128, 8
        $region20: #{tpu_custom_call.1} parent=15 // pred_fallthru
          _
        // Predicated region
        $region21: #{tpu_custom_call.1} parent=15 // pred_check
          %p141 = pneg %p63
        $region22: #{tpu_custom_call.1} parent=15 // pred_check_branch
          %143 = sbr.rel (%p141) target = $region24
        $region23: #{tpu_custom_call.1} parent=15 // pred_region
          %s144 = sand.u32 %s53, 1
          %s145 = scalar_lea.sflag [#allocation6], %s144
          %s146 = sand.u32 %s53, 1
          %s147 = smul.addr %s146, 200
          %s148 = scalar_lea.vmem [#allocation5], %s147
          %s149 = smul.u32 25, %s17
          %s150 = ssub.s32 49, %s149
          %p151 = scmp.lt.s32.totalorder %s150, 25
          %s152 = scalar_select %p151, %s150, 25
          %s153 = smul.u32 128, %s152
          %s155 = ssub.s32 3200, %s153
          %156 = vsyncadd %s145, %s155
          %p157 = scmp.ne.s32.totalorder 0, %s153
          %s158 = smul.addr %s149, 128
          %s159 = scalar_lea.hbm %s1, %s158
          %s160 = smul.u32 8, %s152
          %s161 = sshll.u32 %s148, 4
          %s162 = int_to_ptr.vmem [resolvable:$true] %s161
          %s163 = sshll.u32 %s160, 4
          %167 = dma.hbm_to_vmem [thread:$0]  (%p157), %s159, %s163, %s162, %s145, 128, 128, 8
        $region24: #{tpu_custom_call.1} parent=15 // pred_fallthru
          _
      $region16: #{tpu_custom_call.1} parent=5 // pred_fallthru
        _
      %p168 = scmp.le.s32.totalorder 1, %s17
      %p169 = scmp.lt.s32.totalorder %s17, 3
      %p170 = pnand %p168, %p169
      %p171 = pneg %p170
      // Predicated region
      $region25: #{tpu_custom_call.1} parent=5 // pred_check
        _
      $region26: #{tpu_custom_call.1} parent=5 // pred_check_branch
        %173 = sbr.rel (%p170) target = $region28
      $region27: #{tpu_custom_call.1} parent=5 // pred_region
        %s174 = ssub.s32 %s17, 1
        %s175 = sand.u32 %s30, 1
        %s176 = scalar_lea.sflag [#allocation3], %s175
        %s177 = sand.u32 %s30, 1
        %s178 = smul.addr %s177, 200
        %s179 = scalar_lea.vmem [#allocation2], %s178
        // Predicated region
        $region29: #{tpu_custom_call.1} parent=27 // pred_check
          %p180 = pneg %p43
        $region30: #{tpu_custom_call.1} parent=27 // pred_check_branch
          %182 = sbr.rel (%p180) target = $region32
        $region31: #{tpu_custom_call.1} parent=27 // pred_region
          %183 = dma.done %s176, 3200
        $region32: #{tpu_custom_call.1} parent=27 // pred_fallthru
          _
        %s184 = sand.u32 %s56, 1
        %s185 = scalar_lea.sflag [#allocation6], %s184
        %s186 = sand.u32 %s56, 1
        %s187 = smul.addr %s186, 200
        %s188 = scalar_lea.vmem [#allocation5], %s187
        // Predicated region
        $region33: #{tpu_custom_call.1} parent=27 // pred_check
          %p189 = pneg %p69
        $region34: #{tpu_custom_call.1} parent=27 // pred_check_branch
          %191 = sbr.rel (%p189) target = $region36
        $region35: #{tpu_custom_call.1} parent=27 // pred_region
          %192 = dma.done %s185, 3200
        $region36: #{tpu_custom_call.1} parent=27 // pred_fallthru
          _
        %s193 = sand.u32 %s30, 1
        %s194 = scalar_lea.sflag [#allocation3], %s193
        %s195 = sand.u32 %s30, 1
        %s196 = smul.addr %s195, 200
        %s197 = scalar_lea.vmem [#allocation2], %s196
        %p198 = pneg %p43
        %p199 = pneg %p40
        %s200 = sand.u32 %s56, 1
        %s201 = scalar_lea.sflag [#allocation6], %s200
        %s202 = sand.u32 %s56, 1
        %s203 = smul.addr %s202, 200
        %s204 = scalar_lea.vmem [#allocation5], %s203
        %p205 = pneg %p69
        %p206 = pneg %p66
        %p207 = pneg %p95
        %p208 = pneg %p92
        %s209 = sand.u32 %s82, 1
        %s210 = scalar_lea.sflag [#allocation4], %s209
        %s211 = sand.u32 %s82, 1
        %s212 = smul.addr %s211, 200
        %s213 = scalar_lea.vmem [#allocation7], %s212
        %s214 = smul.u32 25, %s22
        %s215 = ssub.s32 49, %s214
        %p216 = scmp.lt.s32.totalorder %s215, 25
        %s217 = scalar_select %p216, %s215, 25
        %s218 = smul.u32 128, %s217
        %s219 = smul.u32 25, %s22
        %s220 = ssub.s32 49, %s219
        %p221 = scmp.lt.s32.totalorder %s220, 25
        %s222 = scalar_select %p221, %s220, 25
        %s223 = smul.u32 128, %s222
        %s224 = smul.u32 25, %s22
        %s225 = ssub.s32 49, %s224
        %p226 = scmp.lt.s32.totalorder %s225, 25
        %s227 = scalar_select %p226, %s225, 25
        %s228 = smul.u32 128, %s227
        %v229 = vld [vmem:[%s179] sm:$0xff]
        %v230 = vld [vmem:[%s179 + $0x8] sm:$0xff]
        %v231 = vld [vmem:[%s179 + $0x10] sm:$0xff]
        %v232 = vld [vmem:[%s179 + $0x18] sm:$0xff]
        %v233 = vld [vmem:[%s179 + $0x20] sm:$0xff]
        %v234 = vld [vmem:[%s179 + $0x28] sm:$0xff]
        %v235 = vld [vmem:[%s179 + $0x30] sm:$0xff]
        %v236 = vld [vmem:[%s179 + $0x38] sm:$0xff]
        %v237 = vld [vmem:[%s179 + $0x40] sm:$0xff]
        %v238 = vld [vmem:[%s179 + $0x48] sm:$0xff]
        %v239 = vld [vmem:[%s179 + $0x50] sm:$0xff]
        %v240 = vld [vmem:[%s179 + $0x58] sm:$0xff]
        %v241 = vld [vmem:[%s179 + $0x60] sm:$0xff]
        %v242 = vld [vmem:[%s179 + $0x68] sm:$0xff]
        %v243 = vld [vmem:[%s179 + $0x70] sm:$0xff]
        %v244 = vld [vmem:[%s179 + $0x78] sm:$0xff]
        %v245 = vld [vmem:[%s179 + $0x80] sm:$0xff]
        %v246 = vld [vmem:[%s179 + $0x88] sm:$0xff]
        %v247 = vld [vmem:[%s179 + $0x90] sm:$0xff]
        %v248 = vld [vmem:[%s179 + $0x98] sm:$0xff]
        %v249 = vld [vmem:[%s179 + $0xa0] sm:$0xff]
        %v250 = vld [vmem:[%s179 + $0xa8] sm:$0xff]
        %v251 = vld [vmem:[%s179 + $0xb0] sm:$0xff]
        %v252 = vld [vmem:[%s179 + $0xb8] sm:$0xff]
        %v253 = vld [vmem:[%s179 + $0xc0] sm:$0xff]
        %v254 = vld [vmem:[%s188] sm:$0xff]
        %v255 = vld [vmem:[%s188 + $0x8] sm:$0xff]
        %v256 = vld [vmem:[%s188 + $0x10] sm:$0xff]
        %v257 = vld [vmem:[%s188 + $0x18] sm:$0xff]
        %v258 = vld [vmem:[%s188 + $0x20] sm:$0xff]
        %v259 = vld [vmem:[%s188 + $0x28] sm:$0xff]
        %v260 = vld [vmem:[%s188 + $0x30] sm:$0xff]
        %v261 = vld [vmem:[%s188 + $0x38] sm:$0xff]
        %v262 = vld [vmem:[%s188 + $0x40] sm:$0xff]
        %v263 = vld [vmem:[%s188 + $0x48] sm:$0xff]
        %v264 = vld [vmem:[%s188 + $0x50] sm:$0xff]
        %v265 = vld [vmem:[%s188 + $0x58] sm:$0xff]
        %v266 = vld [vmem:[%s188 + $0x60] sm:$0xff]
        %v267 = vld [vmem:[%s188 + $0x68] sm:$0xff]
        %v268 = vld [vmem:[%s188 + $0x70] sm:$0xff]
        %v269 = vld [vmem:[%s188 + $0x78] sm:$0xff]
        %v270 = vld [vmem:[%s188 + $0x80] sm:$0xff]
        %v271 = vld [vmem:[%s188 + $0x88] sm:$0xff]
        %v272 = vld [vmem:[%s188 + $0x90] sm:$0xff]
        %v273 = vld [vmem:[%s188 + $0x98] sm:$0xff]
        %v274 = vld [vmem:[%s188 + $0xa0] sm:$0xff]
        %v275 = vld [vmem:[%s188 + $0xa8] sm:$0xff]
        %v276 = vld [vmem:[%s188 + $0xb0] sm:$0xff]
        %v277 = vld [vmem:[%s188 + $0xb8] sm:$0xff]
        %v278 = vld [vmem:[%s188 + $0xc0] sm:$0xff]
        %v279 = vadd.f32 %v229, %v254
        %v280 = vadd.f32 %v230, %v255
        %v281 = vadd.f32 %v231, %v256
        %v282 = vadd.f32 %v232, %v257
        %v283 = vadd.f32 %v233, %v258
        %v284 = vadd.f32 %v234, %v259
        %v285 = vadd.f32 %v235, %v260
        %v286 = vadd.f32 %v236, %v261
        %v287 = vadd.f32 %v237, %v262
        %v288 = vadd.f32 %v238, %v263
        %v289 = vadd.f32 %v239, %v264
        %v290 = vadd.f32 %v240, %v265
        %v291 = vadd.f32 %v241, %v266
        %v292 = vadd.f32 %v242, %v267
        %v293 = vadd.f32 %v243, %v268
        %v294 = vadd.f32 %v244, %v269
        %v295 = vadd.f32 %v245, %v270
        %v296 = vadd.f32 %v246, %v271
        %v297 = vadd.f32 %v247, %v272
        %v298 = vadd.f32 %v248, %v273
        %v299 = vadd.f32 %v249, %v274
        %v300 = vadd.f32 %v250, %v275
        %v301 = vadd.f32 %v251, %v276
        %v302 = vadd.f32 %v252, %v277
        %v303 = vadd.f32 %v253, %v278
        %v304 = vmax.f32 %v279, 0.0
        %v305 = vmax.f32 %v280, 0.0
        %v306 = vmax.f32 %v281, 0.0
        %v307 = vmax.f32 %v282, 0.0
        %v308 = vmax.f32 %v283, 0.0
        %v309 = vmax.f32 %v284, 0.0
        %v310 = vmax.f32 %v285, 0.0
        %v311 = vmax.f32 %v286, 0.0
        %v312 = vmax.f32 %v287, 0.0
        %v313 = vmax.f32 %v288, 0.0
        %v314 = vmax.f32 %v289, 0.0
        %v315 = vmax.f32 %v290, 0.0
        %v316 = vmax.f32 %v291, 0.0
        %v317 = vmax.f32 %v292, 0.0
        %v318 = vmax.f32 %v293, 0.0
        %v319 = vmax.f32 %v294, 0.0
        %v320 = vmax.f32 %v295, 0.0
        %v321 = vmax.f32 %v296, 0.0
        %v322 = vmax.f32 %v297, 0.0
        %v323 = vmax.f32 %v298, 0.0
        %v324 = vmax.f32 %v299, 0.0
        %v325 = vmax.f32 %v300, 0.0
        %v326 = vmax.f32 %v301, 0.0
        %v327 = vmax.f32 %v302, 0.0
        %v328 = vmax.f32 %v303, 0.0
        %329 = vst [vmem:[%s213] sm:$0xff] %v304
        %330 = vst [vmem:[%s213 + $0x8] sm:$0xff] %v305
        %331 = vst [vmem:[%s213 + $0x10] sm:$0xff] %v306
        %332 = vst [vmem:[%s213 + $0x18] sm:$0xff] %v307
        %333 = vst [vmem:[%s213 + $0x20] sm:$0xff] %v308
        %334 = vst [vmem:[%s213 + $0x28] sm:$0xff] %v309
        %335 = vst [vmem:[%s213 + $0x30] sm:$0xff] %v310
        %336 = vst [vmem:[%s213 + $0x38] sm:$0xff] %v311
        %337 = vst [vmem:[%s213 + $0x40] sm:$0xff] %v312
        %338 = vst [vmem:[%s213 + $0x48] sm:$0xff] %v313
        %339 = vst [vmem:[%s213 + $0x50] sm:$0xff] %v314
        %340 = vst [vmem:[%s213 + $0x58] sm:$0xff] %v315
        %341 = vst [vmem:[%s213 + $0x60] sm:$0xff] %v316
        %342 = vst [vmem:[%s213 + $0x68] sm:$0xff] %v317
        %343 = vst [vmem:[%s213 + $0x70] sm:$0xff] %v318
        %344 = vst [vmem:[%s213 + $0x78] sm:$0xff] %v319
        %345 = vst [vmem:[%s213 + $0x80] sm:$0xff] %v320
        %346 = vst [vmem:[%s213 + $0x88] sm:$0xff] %v321
        %347 = vst [vmem:[%s213 + $0x90] sm:$0xff] %v322
        %348 = vst [vmem:[%s213 + $0x98] sm:$0xff] %v323
        %349 = vst [vmem:[%s213 + $0xa0] sm:$0xff] %v324
        %350 = vst [vmem:[%s213 + $0xa8] sm:$0xff] %v325
        %351 = vst [vmem:[%s213 + $0xb0] sm:$0xff] %v326
        %352 = vst [vmem:[%s213 + $0xb8] sm:$0xff] %v327
        %353 = vst [vmem:[%s213 + $0xc0] sm:$0xff] %v328
        %s354 = sand.u32 %s82, 1
        %s355 = scalar_lea.sflag [#allocation4], %s354
        %s356 = sand.u32 %s82, 1
        %s357 = smul.addr %s356, 200
        %s358 = scalar_lea.vmem [#allocation7], %s357
        // Predicated region
        $region37: #{tpu_custom_call.1} parent=27 // pred_check
          %p359 = pneg %p92
        $region38: #{tpu_custom_call.1} parent=27 // pred_check_branch
          %361 = sbr.rel (%p359) target = $region40
        $region39: #{tpu_custom_call.1} parent=27 // pred_region
          %s362 = smul.u32 25, %s22
          %s363 = ssub.s32 49, %s362
          %p364 = scmp.lt.s32.totalorder %s363, 25
          %s365 = scalar_select %p364, %s363, 25
          %s366 = smul.u32 128, %s365
          %s368 = ssub.s32 3200, %s366
          %369 = vsyncadd %s355, %s368
          %p370 = scmp.ne.s32.totalorder 0, %s366
          %s371 = smul.addr %s362, 128
          %s372 = scalar_lea.hbm %s2, %s371
          %s373 = smul.u32 8, %s365
          %s374 = sshll.u32 %s358, 4
          %s375 = int_to_ptr.vmem [resolvable:$true] %s374
          %s376 = sshll.u32 %s373, 4
          %380 = dma.vmem_to_hbm [thread:$0]  (%p370), %s375, %s376, %s372, %s355, 128, 128, 8
        $region40: #{tpu_custom_call.1} parent=27 // pred_fallthru
          _
      $region28: #{tpu_custom_call.1} parent=5 // pred_fallthru
        _
      %p381 = scmp.le.s32.totalorder 2, %s17
      // Predicated region
      $region41: #{tpu_custom_call.1} parent=5 // pred_check
        %p382 = pneg %p381
      $region42: #{tpu_custom_call.1} parent=5 // pred_check_branch
        %384 = sbr.rel (%p382) target = $region44
      $region43: #{tpu_custom_call.1} parent=5 // pred_region
        %s385 = ssub.s32 %s17, 2
        // Predicated region
        $region45: #{tpu_custom_call.1} parent=43 // pred_check
          %p386 = pneg %p98
        $region46: #{tpu_custom_call.1} parent=43 // pred_check_branch
          %388 = sbr.rel (%p386) target = $region48
        $region47: #{tpu_custom_call.1} parent=43 // pred_region
          %s389 = sand.u32 %s83, 1
          %s390 = scalar_lea.sflag [#allocation4], %s389
          %s391 = sand.u32 %s83, 1
          %s392 = smul.addr %s391, 200
          %s393 = scalar_lea.vmem [#allocation7], %s392
          %394 = dma.done %s390, 3200
        $region48: #{tpu_custom_call.1} parent=43 // pred_fallthru
          _
      $region44: #{tpu_custom_call.1} parent=5 // pred_fallthru
        _
    $region6: #{tpu_custom_call.1} parent=1 // loop_footer
      %s21 = sadd.s32 1, %s17
    $region7: #{tpu_custom_call.1} parent=1 // loop_footer_branch
      %16 = sbr.rel target = $region3
    $region8: #{tpu_custom_call.1} parent=1 // loop_exit
      _
    %395 = vsyncpa [#allocation3], 1
    %s396 = scalar_lea.sflag [#allocation3], 1
    %397 = vsyncpa %s396, 1
    %398 = vsyncpa [#allocation6], 1
    %s399 = scalar_lea.sflag [#allocation6], 1
    %400 = vsyncpa %s399, 1
    %401 = vsyncpa [#allocation4], 1
    %s402 = scalar_lea.sflag [#allocation4], 1
    %403 = vsyncpa %s402, 1

</llo_original>
